<compile_context>
chip_gen: v7x
topology: tpu7x:2x2x1
jax: 0.10.0
libtpu: 0.0.40
codegen_flags: <defaults>
</compile_context>

<pallas_src>
import math

import jax
import jax.numpy as jnp
from jax.experimental import pallas as pl
from jax.experimental.pallas import tpu as pltpu


def _round_up(x, m):
    return (x + m - 1) // m * m


def _cdiv(a, b):
    return -(-a // b)


# -----------------------------------------------------------------------------
# Kernel: one batch tile per grid step; weights stay VMEM-resident.
#   s_ref   : (TB, IN_P)        streamed input (f32 or bf16)
#   w0_ref  : (IN_P, HEAD_W)    fused base->(actor0 | critic0) weight
#   b0_ref  : (1, HEAD_W)       f32 bias
#   w1_ref  : (HEAD_W, OUT_P)   block-diagonal [actor1 ; critic1]
#   b1_ref  : (1, OUT_P)        f32 bias
#   out_ref : (TB, OUT_P)       cols [0:act) = policy params, col act = value
# -----------------------------------------------------------------------------
def actor_critic_kernel(s_ref, w0_ref, b0_ref, w1_ref, b1_ref, out_ref):
    w_dtype = w0_ref.dtype

    s = s_ref[...]
    if s.dtype != w_dtype:            # trace-time check; wrapper normally matches dtypes
        s = s.astype(w_dtype)

    # fused base + head-0 matmul (MXU, f32 accumulation); bias-add + ReLU in f32 (VPU)
    z = jnp.dot(s, w0_ref[...], preferred_element_type=jnp.float32) + b0_ref[...]
    z = jnp.maximum(z, 0.0)

    # fused head-1 (block-diagonal): packs [policy | value | zero-pad], lane-dense store
    out_ref[...] = (
        jnp.dot(z.astype(w_dtype), w1_ref[...], preferred_element_type=jnp.float32)
        + b1_ref[...]
    ).astype(out_ref.dtype)


# -----------------------------------------------------------------------------
# Parameter construction (matches PyTorch xavier_uniform_ weights, zero biases),
# then algebraically fused + zero-padded into the kernel layout.
# -----------------------------------------------------------------------------
def xavier_uniform(key, fan_out, fan_in, gain=1.0):
    a = gain * math.sqrt(6.0 / (fan_in + fan_out))
    return jax.random.uniform(key, (fan_out, fan_in), jnp.float32,
                              minval=-a, maxval=a)


def init_params(key, input_size, hidden_size, action_param_size,
                dtype=jnp.float32):
    IN_P = _round_up(input_size, 8)                 # streamed input: no 128-lane pad
    HEAD_W = _round_up(2 * hidden_size, 128)        # packed [actor0 | critic0] columns
    OUT_P = _round_up(action_param_size + 1, 128)   # packed [policy | value] columns

    keys = jax.random.split(key, 5)
    # raw PyTorch-equivalent weights, pre-transposed to (in, out)
    bw = xavier_uniform(keys[0], hidden_size, input_size).T            # (in, hid)
    a0w = xavier_uniform(keys[1], hidden_size, hidden_size).T          # (hid, hid)
    a1w = xavier_uniform(keys[2], action_param_size, hidden_size).T    # (hid, act)
    c0w = xavier_uniform(keys[3], hidden_size, hidden_size).T          # (hid, hid)
    c1w = xavier_uniform(keys[4], 1, hidden_size).T                    # (hid, 1)

    zb = lambda n: jnp.zeros((1, n), jnp.float32)
    raw = {"bw": bw, "bb": zb(hidden_size),
           "a0w": a0w, "a0b": zb(hidden_size),
           "a1w": a1w, "a1b": zb(action_param_size),
           "c0w": c0w, "c0b": zb(hidden_size),
           "c1w": c1w, "c1b": zb(1)}

    # pack head-0: actor cols [0:hid), critic cols [hid:2*hid)
    h0w = jnp.concatenate([a0w, c0w], axis=1)                          # (hid, 2*hid)
    h0b = jnp.concatenate([raw["a0b"], raw["c0b"]], axis=1)            # (1, 2*hid)

    # algebraic fusion of the shared base Linear into head-0
    # (exact: create_mlp([input, hidden]) has no activation after the base layer)
    w0 = bw @ h0w                                                      # (in, 2*hid)
    b0 = raw["bb"] @ h0w + h0b                                         # (1, 2*hid)

    w0_p = jnp.zeros((IN_P, HEAD_W), jnp.float32)
    w0_p = w0_p.at[:input_size, :2 * hidden_size].set(w0)
    b0_p = jnp.zeros((1, HEAD_W), jnp.float32).at[:, :2 * hidden_size].set(b0)

    # head-1 block-diagonal: rows [0:hid) feed the policy cols,
    # rows [hid:2*hid) feed the value column.
    w1_p = jnp.zeros((HEAD_W, OUT_P), jnp.float32)
    w1_p = w1_p.at[:hidden_size, :action_param_size].set(a1w)
    w1_p = w1_p.at[hidden_size:2 * hidden_size, action_param_size].set(c1w[:, 0])
    b1_p = jnp.zeros((1, OUT_P), jnp.float32)
    b1_p = b1_p.at[:, :action_param_size].set(raw["a1b"])
    b1_p = b1_p.at[:, action_param_size].set(raw["c1b"][0, 0])

    return {
        # MXU inputs cast to requested dtype (f32 or bf16); biases stay f32
        "w0": w0_p.astype(dtype), "b0": b0_p,
        "w1": w1_p.astype(dtype), "b1": b1_p,
        "raw": raw,
    }


# -----------------------------------------------------------------------------
# Wrapper: batch-tiled pallas_call.
# -----------------------------------------------------------------------------
def actor_critic_forward(s, params, action_param_size, *, block_rows=1024,
                         out_dtype=None):
    B, in_dim = s.shape
    IN_P, HEAD_W = params["w0"].shape
    OUT_P = params["w1"].shape[1]
    w_dtype = params["w0"].dtype
    if out_dtype is None:
        out_dtype = w_dtype   # stream output at the activation width (bf16 or f32)

    # batch tile: multiple of 8 sublanes, divides B as evenly as possible, <= block_rows
    n_steps = max(1, _cdiv(B, block_rows))
    TB = _round_up(_cdiv(B, n_steps), 8)
    # make sure there are >=2 grid steps when possible so v7x's 2 TensorCores both work
    if _cdiv(B, TB) < 2 and TB > 8:
        TB = _round_up(_cdiv(TB, 2), 8)
    B_P = _round_up(B, TB)

    # stream s in the weight dtype; avoid an extra HBM copy when nothing changes
    s_in = s if s.dtype == w_dtype else s.astype(w_dtype)
    if (B_P != B) or (IN_P != in_dim):
        s_in = jnp.pad(s_in, ((0, B_P - B), (0, IN_P - in_dim)))

    def resident(arr):  # weights/biases: full array, VMEM-resident across grid steps
        return pl.BlockSpec(arr.shape, lambda i: (0, 0))

    itemsize = lambda dt: jnp.dtype(dt).itemsize
    weight_bytes = sum(int(params[k].size) * itemsize(params[k].dtype)
                       for k in ("w0", "b0", "w1", "b1"))
    cost = pl.CostEstimate(
        flops=2 * B_P * (IN_P * HEAD_W + HEAD_W * OUT_P),
        transcendentals=0,
        bytes_accessed=(B_P * IN_P * itemsize(s_in.dtype)
                        + B_P * OUT_P * itemsize(out_dtype)
                        + weight_bytes))

    out = pl.pallas_call(
        actor_critic_kernel,
        out_shape=jax.ShapeDtypeStruct((B_P, OUT_P), out_dtype),
        grid=(B_P // TB,),
        in_specs=[
            pl.BlockSpec((TB, IN_P), lambda i: (i, 0)),      # s: tiled over batch
            resident(params["w0"]), resident(params["b0"]),
            resident(params["w1"]), resident(params["b1"]),
        ],
        out_specs=pl.BlockSpec((TB, OUT_P), lambda i: (i, 0)),
        compiler_params=pltpu.CompilerParams(
            dimension_semantics=("parallel",),               # megacore sharding on v7x
        ),
        cost_estimate=cost,
    )(s_in, params["w0"], params["b0"], params["w1"], params["b1"])

    policy_params = out[:B, :action_param_size]
    val_pred = out[:B, action_param_size:action_param_size + 1]
    return policy_params, val_pred


# -----------------------------------------------------------------------------
# Pure-JAX reference (raw, unfused, unpadded weights).
# -----------------------------------------------------------------------------
def reference_forward(s, raw):
    h = s @ raw["bw"] + raw["bb"]
    a = jnp.maximum(h @ raw["a0w"] + raw["a0b"], 0.0)
    pol = a @ raw["a1w"] + raw["a1b"]
    c = jnp.maximum(h @ raw["c0w"] + raw["c0b"], 0.0)
    val = c @ raw["c1w"] + raw["c1b"]
    return pol, val


if __name__ == "__main__":
    batch = 8
    input_size = 32
    hidden_size = 32
    action_param_size = 8

    key = jax.random.PRNGKey(0)
    k_s, k_p = jax.random.split(key)
    s = jax.random.normal(k_s, (batch, input_size), jnp.float32)

    # ---- f32 path: tight correctness check vs unfused pure-JAX reference ----
    params = init_params(k_p, input_size, hidden_size, action_param_size,
                         dtype=jnp.float32)
    policy_params, val_pred = actor_critic_forward(s, params, action_param_size)
    policy_params = jax.block_until_ready(policy_params)
    val_pred = jax.block_until_ready(val_pred)

    ref_pol, ref_val = reference_forward(s, params["raw"])
    assert policy_params.shape == (batch, action_param_size)
    assert val_pred.shape == (batch, 1)
    assert jnp.allclose(policy_params, ref_pol, atol=1e-4, rtol=1e-4)
    assert jnp.allclose(val_pred, ref_val, atol=1e-4, rtol=1e-4)

    # ---- bf16 streaming path (weights + s + out in bf16; f32 accumulation) ----
    params_bf16 = init_params(k_p, input_size, hidden_size, action_param_size,
                              dtype=jnp.bfloat16)
    pol_b, val_b = actor_critic_forward(s, params_bf16, action_param_size)
    pol_b = jax.block_until_ready(pol_b)
    val_b = jax.block_until_ready(val_b)
    assert jnp.allclose(pol_b.astype(jnp.float32), ref_pol, atol=1e-1, rtol=1e-1)
    assert jnp.allclose(val_b.astype(jnp.float32), ref_val, atol=1e-1, rtol=1e-1)

    # ---- exercise batch padding + a multi-step grid (batch not multiple of tile) ----
    s2 = jax.random.normal(k_s, (10, input_size), jnp.float32)
    pol2, val2 = actor_critic_forward(s2, params, action_param_size)
    pol2 = jax.block_until_ready(pol2)
    val2 = jax.block_until_ready(val2)
    ref_pol2, ref_val2 = reference_forward(s2, params["raw"])
    assert pol2.shape == (10, action_param_size) and val2.shape == (10, 1)
    assert jnp.allclose(pol2, ref_pol2, atol=1e-4, rtol=1e-4)
    assert jnp.allclose(val2, ref_val2, atol=1e-4, rtol=1e-4)

    print("KERNEL_OK")
</pallas_src>

<mosaic_0001>
module attributes {stable_mosaic.version = 11 : i64} {
  func.func @actor_critic_kernel(%arg0: i32, %arg1: memref<8x32xf32, #tpu.memory_space<vmem>>, %arg2: memref<32x128xf32, #tpu.memory_space<vmem>>, %arg3: memref<1x128xf32, #tpu.memory_space<vmem>>, %arg4: memref<128x128xf32, #tpu.memory_space<vmem>>, %arg5: memref<1x128xf32, #tpu.memory_space<vmem>>, %arg6: memref<8x128xf32, #tpu.memory_space<vmem>>) attributes {dimension_semantics = [#tpu.dimension_semantics<parallel>], iteration_bounds = array<i64: 1>, scalar_prefetch = 0 : i64, scratch_operands = 0 : i64, tpu.core_type = #tpu.core_type<tc>, window_params = [{transform_indices = @transform_0, window_bounds = array<i64: 8, 32>}, {pipeline_mode = #tpu.pipeline_mode<synchronous>, transform_indices = @transform_1, window_bounds = array<i64: 32, 128>}, {pipeline_mode = #tpu.pipeline_mode<synchronous>, transform_indices = @transform_2, window_bounds = array<i64: 1, 128>}, {pipeline_mode = #tpu.pipeline_mode<synchronous>, transform_indices = @transform_3, window_bounds = array<i64: 128, 128>}, {pipeline_mode = #tpu.pipeline_mode<synchronous>, transform_indices = @transform_4, window_bounds = array<i64: 1, 128>}, {transform_indices = @transform_5, window_bounds = array<i64: 8, 128>}]} {
    %c0 = arith.constant 0 : index
    %c0_0 = arith.constant 0 : index
    %0 = vector.load %arg1[%c0, %c0_0] : memref<8x32xf32, #tpu.memory_space<vmem>>, vector<8x32xf32>
    %c0_1 = arith.constant 0 : index
    %c0_2 = arith.constant 0 : index
    %1 = vector.load %arg2[%c0_1, %c0_2] : memref<32x128xf32, #tpu.memory_space<vmem>>, vector<32x128xf32>
    %cst = arith.constant dense<0.000000e+00> : vector<8x128xf32>
    %2 = tpu.matmul %0, %1, %cst {dimension_numbers = #tpu.dot_dimension_numbers<[1], [0], [0], [1], [0, 0, 1, 1], [], []>} : vector<8x32xf32>, vector<32x128xf32>, vector<8x128xf32> -> vector<8x128xf32>
    %c0_3 = arith.constant 0 : index
    %c0_4 = arith.constant 0 : index
    %3 = vector.load %arg3[%c0_3, %c0_4] : memref<1x128xf32, #tpu.memory_space<vmem>>, vector<1x128xf32>
    %4 = vector.broadcast %3 : vector<1x128xf32> to vector<8x128xf32>
    %5 = arith.addf %2, %4 : vector<8x128xf32>
    %cst_5 = arith.constant 0.000000e+00 : f32
    %6 = vector.broadcast %cst_5 : f32 to vector<8x128xf32>
    %7 = arith.maximumf %5, %6 : vector<8x128xf32>
    %c0_6 = arith.constant 0 : index
    %c0_7 = arith.constant 0 : index
    %8 = vector.load %arg4[%c0_6, %c0_7] : memref<128x128xf32, #tpu.memory_space<vmem>>, vector<128x128xf32>
    %cst_8 = arith.constant dense<0.000000e+00> : vector<8x128xf32>
    %9 = tpu.matmul %7, %8, %cst_8 {dimension_numbers = #tpu.dot_dimension_numbers<[1], [0], [0], [1], [0, 0, 1, 1], [], []>} : vector<8x128xf32>, vector<128x128xf32>, vector<8x128xf32> -> vector<8x128xf32>
    %c0_9 = arith.constant 0 : index
    %c0_10 = arith.constant 0 : index
    %10 = vector.load %arg5[%c0_9, %c0_10] : memref<1x128xf32, #tpu.memory_space<vmem>>, vector<1x128xf32>
    %11 = vector.broadcast %10 : vector<1x128xf32> to vector<8x128xf32>
    %12 = arith.addf %9, %11 : vector<8x128xf32>
    %c0_11 = arith.constant 0 : index
    %c0_12 = arith.constant 0 : index
    %13 = vector.load %arg6[%c0_11, %c0_12] : memref<8x128xf32, #tpu.memory_space<vmem>>, vector<8x128xf32>
    tpu.vector_store %arg6[%c0_11, %c0_12], %12 {strides = array<i32>} : memref<8x128xf32, #tpu.memory_space<vmem>>, vector<8x128xf32>,
    return
  }
  func.func @transform_0(%arg0: i32) -> (i32, i32) {
    %c0_i32 = arith.constant 0 : i32
    %c0_i32_0 = arith.constant 0 : i32
    return %arg0, %c0_i32 : i32, i32
  }
  func.func @transform_1(%arg0: i32) -> (i32, i32) {
    %c0_i32 = arith.constant 0 : i32
    %c0_i32_0 = arith.constant 0 : i32
    %c0_i32_1 = arith.constant 0 : i32
    return %c0_i32, %c0_i32_0 : i32, i32
  }
  func.func @transform_2(%arg0: i32) -> (i32, i32) {
    %c0_i32 = arith.constant 0 : i32
    %c0_i32_0 = arith.constant 0 : i32
    %c0_i32_1 = arith.constant 0 : i32
    return %c0_i32, %c0_i32_0 : i32, i32
  }
  func.func @transform_3(%arg0: i32) -> (i32, i32) {
    %c0_i32 = arith.constant 0 : i32
    %c0_i32_0 = arith.constant 0 : i32
    %c0_i32_1 = arith.constant 0 : i32
    return %c0_i32, %c0_i32_0 : i32, i32
  }
  func.func @transform_4(%arg0: i32) -> (i32, i32) {
    %c0_i32 = arith.constant 0 : i32
    %c0_i32_0 = arith.constant 0 : i32
    %c0_i32_1 = arith.constant 0 : i32
    return %c0_i32, %c0_i32_0 : i32, i32
  }
  func.func @transform_5(%arg0: i32) -> (i32, i32) {
    %c0_i32 = arith.constant 0 : i32
    %c0_i32_0 = arith.constant 0 : i32
    return %arg0, %c0_i32 : i32, i32
  }
}

</mosaic_0001>

<llo_original>
// kernel: tpu_custom_call.1
$region0: #{tpu_custom_call.1}
  #allocation0 [shape = 'u32[]', space=smem, size = 0x4, offset = 0x4, fixed_abs, tag = 'smem constant byte address 0x4 - core index']
  #allocation1 [shape = 'u32[144,128]{1,0:T(1,128)}', space=vmem, size = 0x12000, scoped, tag = 'internal scratch']
  %s0 = inlined_call_operand.hbm [shape: f32[8,32], index: 0, kind: input, shape index: {}]
  %s1 = inlined_call_operand.hbm [shape: f32[32,128], index: 1, kind: input, shape index: {}]
  %s2 = inlined_call_operand.vmem [shape: f32[1,128], index: 2, kind: input, shape index: {}]
  %s3 = inlined_call_operand.hbm [shape: f32[128,128], index: 3, kind: input, shape index: {}]
  %s4 = inlined_call_operand.vmem [shape: f32[1,128], index: 4, kind: input, shape index: {}]
  %s5 = inlined_call_operand.hbm [shape: f32[8,128], index: 5, kind: output, shape index: {}]
  %s6 = sld [smem:[#allocation0]]
  $region42: #{tpu_custom_call.1} parent=0
    _
  %s8 = ssub.s32 1, %s6
  %s9 = scalar_select 0, %s8, %s6
  $region1: #{tpu_custom_call.1} parent=0
    #allocation2 [shape = 'u8[4096]{0}', space=vmem, size = 0x1000, scoped, tag = 'input window, operand 0, single buffered']
    #allocation3 [shape = 's32[1]{0}', space=sflag, size = 0x4, scoped, tag = 'scoped memory for tpu_custom_call.1']
    #allocation4 [shape = 's32[1]{0}', space=sflag, size = 0x4, scoped, tag = 'scoped memory for tpu_custom_call.1']
    #allocation5 [shape = 'u8[16384]{0}', space=vmem, size = 0x4000, scoped, tag = 'input window, operand 1, single buffered']
    #allocation6 [shape = 's32[1]{0}', space=sflag, size = 0x4, scoped, tag = 'scoped memory for tpu_custom_call.1']
    #allocation7 [shape = 'u8[65536]{0}', space=vmem, size = 0x10000, scoped, tag = 'input window, operand 3, single buffered']
    #allocation8 [shape = 'u8[4096]{0}', space=vmem, size = 0x1000, scoped, tag = 'output window, operand 0, single buffered']
    %10 = vsyncpa [#allocation3], 0
    %11 = vsyncpa [#allocation6], 0
    %12 = vsyncpa [#allocation4], 0
    // Predicated region
    $region2: #{tpu_custom_call.1} parent=1 // pred_check
      _
    $region3: #{tpu_custom_call.1} parent=1 // pred_check_branch
      %14 = sbr.rel (0) target = $region5
    $region4: #{tpu_custom_call.1} parent=1 // pred_region
      %s16 = ssub.s32 128, 128
      %17 = vsyncadd [#allocation3], %s16
      %s19 = sshll.u32 [#allocation2], 4
      %s20 = int_to_ptr.vmem [resolvable:$true] %s19
      %22 = dma.hbm_to_vmem [thread:$0]  %s0, 128, %s20, [#allocation3]
    $region5: #{tpu_custom_call.1} parent=1 // pred_fallthru
      _
    // Predicated region
    $region6: #{tpu_custom_call.1} parent=1 // pred_check
      _
    $region7: #{tpu_custom_call.1} parent=1 // pred_check_branch
      %24 = sbr.rel (0) target = $region9
    $region8: #{tpu_custom_call.1} parent=1 // pred_region
      %s26 = ssub.s32 512, 512
      %27 = vsyncadd [#allocation6], %s26
      %s28 = sshll.u32 [#allocation5], 4
      %s29 = int_to_ptr.vmem [resolvable:$true] %s28
      %34 = dma.hbm_to_vmem [thread:$0]  %s1, 512, %s29, [#allocation6], 128, 128, 8
    $region9: #{tpu_custom_call.1} parent=1 // pred_fallthru
      _
    // Predicated region
    $region10: #{tpu_custom_call.1} parent=1 // pred_check
      _
    $region11: #{tpu_custom_call.1} parent=1 // pred_check_branch
      %36 = sbr.rel (0) target = $region13
    $region12: #{tpu_custom_call.1} parent=1 // pred_region
      _
    $region13: #{tpu_custom_call.1} parent=1 // pred_fallthru
      _
    // Predicated region
    $region14: #{tpu_custom_call.1} parent=1 // pred_check
      _
    $region15: #{tpu_custom_call.1} parent=1 // pred_check_branch
      %38 = sbr.rel (0) target = $region17
    $region16: #{tpu_custom_call.1} parent=1 // pred_region
      %s40 = ssub.s32 2048, 2048
      %41 = vsyncadd [#allocation6], %s40
      %s42 = sshll.u32 [#allocation7], 4
      %s43 = int_to_ptr.vmem [resolvable:$true] %s42
      %48 = dma.hbm_to_vmem [thread:$0]  %s3, 2048, %s43, [#allocation6], 128, 128, 8
    $region17: #{tpu_custom_call.1} parent=1 // pred_fallthru
      _
    // Predicated region
    $region18: #{tpu_custom_call.1} parent=1 // pred_check
      _
    $region19: #{tpu_custom_call.1} parent=1 // pred_check_branch
      %50 = sbr.rel (0) target = $region21
    $region20: #{tpu_custom_call.1} parent=1 // pred_region
      _
    $region21: #{tpu_custom_call.1} parent=1 // pred_fallthru
      _
    // Predicated region
    $region22: #{tpu_custom_call.1} parent=1 // pred_check
      _
    $region23: #{tpu_custom_call.1} parent=1 // pred_check_branch
      %52 = sbr.rel (0) target = $region25
    $region24: #{tpu_custom_call.1} parent=1 // pred_region
      %53 = dma.done [#allocation3], 128
    $region25: #{tpu_custom_call.1} parent=1 // pred_fallthru
      _
    // Predicated region
    $region26: #{tpu_custom_call.1} parent=1 // pred_check
      _
    $region27: #{tpu_custom_call.1} parent=1 // pred_check_branch
      %55 = sbr.rel (0) target = $region29
    $region28: #{tpu_custom_call.1} parent=1 // pred_region
      %56 = dma.done [#allocation6], 512
    $region29: #{tpu_custom_call.1} parent=1 // pred_fallthru
      _
    // Predicated region
    $region30: #{tpu_custom_call.1} parent=1 // pred_check
      _
    $region31: #{tpu_custom_call.1} parent=1 // pred_check_branch
      %58 = sbr.rel (0) target = $region33
    $region32: #{tpu_custom_call.1} parent=1 // pred_region
      %59 = dma.done [#allocation6], 2048
    $region33: #{tpu_custom_call.1} parent=1 // pred_fallthru
      _
    %v60 = vld [vmem:[#allocation2] sm:$0xff]
    %v61 = vld [vmem:[#allocation5] sm:$0xff]
    %v62 = vld [vmem:[#allocation5 + $0x8] sm:$0xff]
    %v63 = vld [vmem:[#allocation5 + $0x10] sm:$0xff]
    %v64 = vld [vmem:[#allocation5 + $0x18] sm:$0xff]
    %v65 = vld [vmem:[%s2] sm:$0x1]
    %v67 = vlaneseq
    %v68 = vshrl.u32 %v67, 7
    %v69 = vsub.s32 0, %v68
    %v70 = vrot.slane %v65, %v69
    %vm72 = vcmask 261120
    %v74 = vsel %vm72, %v60, 0
    %76 = vmatprep.subr.mxu0 0.0
    %77 = vmatpush1.msra.mxu0 %v61
    %78 = vmatprep.subr.mxu0 0.0
    %79 = vmatpush1.msra.mxu0 %v62
    %80 = vmatprep.subr.mxu0 0.0
    %81 = vmatpush1.msra.mxu0 %v63
    %82 = vmatprep.subr.mxu0 0.0
    %83 = vmatpush1.msra.mxu0 %v64
    %84 = vmatprep.subr.mxu0 0.0
    %85 = vmatpush1.msra.mxu0 0.0
    %86 = vmatprep.subr.mxu0 0.0
    %87 = vmatpush1.msra.mxu0 0.0
    %88 = vmatprep.subr.mxu0 0.0
    %89 = vmatpush1.msra.mxu0 0.0
    %90 = vmatprep.subr.mxu0 0.0
    %91 = vmatpush1.msra.mxu0 0.0
    %92 = vmatprep.subr.mxu0 0.0
    %93 = vmatpush1.msra.mxu0 0.0
    %94 = vmatprep.subr.mxu0 0.0
    %95 = vmatpush1.msra.mxu0 0.0
    %96 = vmatprep.subr.mxu0 0.0
    %97 = vmatpush1.msra.mxu0 0.0
    %98 = vmatprep.subr.mxu0 0.0
    %99 = vmatpush1.msra.mxu0 0.0
    %100 = vmatprep.subr.mxu0 0.0
    %101 = vmatpush1.msra.mxu0 0.0
    %102 = vmatprep.subr.mxu0 0.0
    %103 = vmatpush1.msra.mxu0 0.0
    %104 = vmatprep.subr.mxu0 0.0
    %105 = vmatpush1.msra.mxu0 0.0
    %106 = vmatprep.subr.mxu0 0.0
    %107 = vmatpush1.msra.mxu0 0.0
    %108 = vmatprep.subr.mxu0 0.0
    %109 = vmatpush1.msra.mxu0 0.0
    %110 = vmatprep.subr.mxu0 0.0
    %111 = vmatpush1.msra.mxu0 0.0
    %112 = vmatprep.subr.mxu0 0.0
    %113 = vmatpush1.msra.mxu0 0.0
    %114 = vmatprep.subr.mxu0 0.0
    %115 = vmatpush1.msra.mxu0 0.0
    %116 = vmatprep.subr.mxu0 0.0
    %117 = vmatpush1.msra.mxu0 0.0
    %118 = vmatprep.subr.mxu0 0.0
    %119 = vmatpush1.msra.mxu0 0.0
    %120 = vmatprep.subr.mxu0 0.0
    %121 = vmatpush1.msra.mxu0 0.0
    %122 = vmatprep.subr.mxu0 0.0
    %123 = vmatpush1.msra.mxu0 0.0
    %124 = vmatprep.subr.mxu0 0.0
    %125 = vmatpush1.msra.mxu0 0.0
    %126 = vmatprep.subr.mxu0 0.0
    %127 = vmatpush1.msra.mxu0 0.0
    %128 = vmatprep.subr.mxu0 0.0
    %129 = vmatpush1.msra.mxu0 0.0
    %130 = vmatprep.subr.mxu0 0.0
    %131 = vmatpush1.msra.mxu0 0.0
    %132 = vmatprep.subr.mxu0 0.0
    %133 = vmatpush1.msra.mxu0 0.0
    %134 = vmatprep.subr.mxu0 0.0
    %135 = vmatpush1.msra.mxu0 0.0
    %136 = vmatprep.subr.mxu0 0.0
    %137 = vmatpush1.msra.mxu0 0.0
    %138 = vmatprep.subr.mxu0 0.0
    %139 = vmatpush1.msra.mxu0 0.0
    %140 = vmatprep.mubr.f32.mxu0 0.0
    %141 = vmatmul.mubr.f32.gmra.mrb[0].mxu0 %v74
    %v142 = vpop.f32.mrb[0].mxu0
    %v143 = vadd.f32 %v70, %v142
    %v144 = vpop.f32.mrb[0].mxu0
    %145 = vdwg.mxu0
    %v146 = vmax.f32 %v143, 0.0
    %v147 = vld [vmem:[#allocation7] sm:$0xff]
    %v148 = vld [vmem:[#allocation7 + $0x8] sm:$0xff]
    %v149 = vld [vmem:[#allocation7 + $0x10] sm:$0xff]
    %v150 = vld [vmem:[#allocation7 + $0x18] sm:$0xff]
    %v151 = vld [vmem:[#allocation7 + $0x20] sm:$0xff]
    %v152 = vld [vmem:[#allocation7 + $0x28] sm:$0xff]
    %v153 = vld [vmem:[#allocation7 + $0x30] sm:$0xff]
    %v154 = vld [vmem:[#allocation7 + $0x38] sm:$0xff]
    %v155 = vld [vmem:[#allocation7 + $0x40] sm:$0xff]
    %v156 = vld [vmem:[#allocation7 + $0x48] sm:$0xff]
    %v157 = vld [vmem:[#allocation7 + $0x50] sm:$0xff]
    %v158 = vld [vmem:[#allocation7 + $0x58] sm:$0xff]
    %v159 = vld [vmem:[#allocation7 + $0x60] sm:$0xff]
    %v160 = vld [vmem:[#allocation7 + $0x68] sm:$0xff]
    %v161 = vld [vmem:[#allocation7 + $0x70] sm:$0xff]
    %v162 = vld [vmem:[#allocation7 + $0x78] sm:$0xff]
    %v163 = vld [vmem:[%s4] sm:$0x1]
    %v165 = vlaneseq
    %v166 = vshrl.u32 %v165, 7
    %v167 = vsub.s32 0, %v166
    %v168 = vrot.slane %v163, %v167
    %170 = vmatprep.subr.mxu0 0.0
    %171 = vmatpush1.msra.mxu0 %v147
    %172 = vmatprep.subr.mxu0 0.0
    %173 = vmatpush1.msra.mxu0 %v148
    %174 = vmatprep.subr.mxu0 0.0
    %175 = vmatpush1.msra.mxu0 %v149
    %176 = vmatprep.subr.mxu0 0.0
    %177 = vmatpush1.msra.mxu0 %v150
    %178 = vmatprep.subr.mxu0 0.0
    %179 = vmatpush1.msra.mxu0 %v151
    %180 = vmatprep.subr.mxu0 0.0
    %181 = vmatpush1.msra.mxu0 %v152
    %182 = vmatprep.subr.mxu0 0.0
    %183 = vmatpush1.msra.mxu0 %v153
    %184 = vmatprep.subr.mxu0 0.0
    %185 = vmatpush1.msra.mxu0 %v154
    %186 = vmatprep.subr.mxu0 0.0
    %187 = vmatpush1.msra.mxu0 %v155
    %188 = vmatprep.subr.mxu0 0.0
    %189 = vmatpush1.msra.mxu0 %v156
    %190 = vmatprep.subr.mxu0 0.0
    %191 = vmatpush1.msra.mxu0 %v157
    %192 = vmatprep.subr.mxu0 0.0
    %193 = vmatpush1.msra.mxu0 %v158
    %194 = vmatprep.subr.mxu0 0.0
    %195 = vmatpush1.msra.mxu0 %v159
    %196 = vmatprep.subr.mxu0 0.0
    %197 = vmatpush1.msra.mxu0 %v160
    %198 = vmatprep.subr.mxu0 0.0
    %199 = vmatpush1.msra.mxu0 %v161
    %200 = vmatprep.subr.mxu0 0.0
    %201 = vmatpush1.msra.mxu0 %v162
    %202 = vmatprep.subr.mxu0 0.0
    %203 = vmatpush1.msra.mxu0 0.0
    %204 = vmatprep.subr.mxu0 0.0
    %205 = vmatpush1.msra.mxu0 0.0
    %206 = vmatprep.subr.mxu0 0.0
    %207 = vmatpush1.msra.mxu0 0.0
    %208 = vmatprep.subr.mxu0 0.0
    %209 = vmatpush1.msra.mxu0 0.0
    %210 = vmatprep.subr.mxu0 0.0
    %211 = vmatpush1.msra.mxu0 0.0
    %212 = vmatprep.subr.mxu0 0.0
    %213 = vmatpush1.msra.mxu0 0.0
    %214 = vmatprep.subr.mxu0 0.0
    %215 = vmatpush1.msra.mxu0 0.0
    %216 = vmatprep.subr.mxu0 0.0
    %217 = vmatpush1.msra.mxu0 0.0
    %218 = vmatprep.subr.mxu0 0.0
    %219 = vmatpush1.msra.mxu0 0.0
    %220 = vmatprep.subr.mxu0 0.0
    %221 = vmatpush1.msra.mxu0 0.0
    %222 = vmatprep.subr.mxu0 0.0
    %223 = vmatpush1.msra.mxu0 0.0
    %224 = vmatprep.subr.mxu0 0.0
    %225 = vmatpush1.msra.mxu0 0.0
    %226 = vmatprep.subr.mxu0 0.0
    %227 = vmatpush1.msra.mxu0 0.0
    %228 = vmatprep.subr.mxu0 0.0
    %229 = vmatpush1.msra.mxu0 0.0
    %230 = vmatprep.subr.mxu0 0.0
    %231 = vmatpush1.msra.mxu0 0.0
    %232 = vmatprep.subr.mxu0 0.0
    %233 = vmatpush1.msra.mxu0 0.0
    %234 = vmatprep.mubr.f32.mxu0 0.0
    %235 = vmatmul.mubr.f32.gmra.mrb[0].mxu0 %v146
    %v236 = vpop.f32.mrb[0].mxu0
    %v237 = vadd.f32 %v168, %v236
    %v238 = vpop.f32.mrb[0].mxu0
    %239 = vdwg.mxu0
    %240 = vst [vmem:[#allocation8] sm:$0xff] %v237
    // Predicated region
    $region34: #{tpu_custom_call.1} parent=1 // pred_check
      _
    $region35: #{tpu_custom_call.1} parent=1 // pred_check_branch
      %242 = sbr.rel (0) target = $region37
    $region36: #{tpu_custom_call.1} parent=1 // pred_region
      %s244 = ssub.s32 128, 128
      %245 = vsyncadd [#allocation4], %s244
      %s247 = sshll.u32 [#allocation8], 4
      %s248 = int_to_ptr.vmem [resolvable:$true] %s247
      %250 = dma.vmem_to_hbm [thread:$0]  %s248, 128, %s5, [#allocation4]
    $region37: #{tpu_custom_call.1} parent=1 // pred_fallthru
      _
    // Predicated region
    $region38: #{tpu_custom_call.1} parent=1 // pred_check
      _
    $region39: #{tpu_custom_call.1} parent=1 // pred_check_branch
      %252 = sbr.rel (0) target = $region41
    $region40: #{tpu_custom_call.1} parent=1 // pred_region
      %253 = dma.done [#allocation4], 128
    $region41: #{tpu_custom_call.1} parent=1 // pred_fallthru
      _
    %254 = vsyncpa [#allocation3], 1
    %255 = vsyncpa [#allocation6], 1
    %256 = vsyncpa [#allocation4], 1

</llo_original>
